<compile_context>
chip_gen: v6e
topology: v6e:2x2x1
jax: 0.10.0
libtpu: 0.0.40
codegen_flags: <defaults>
</compile_context>

<pallas_src>
import numpy as np
import jax
import jax.numpy as jnp
from jax.experimental import pallas as pl
from jax.experimental.pallas import tpu as pltpu

hierarchy_dict = {
    65: [0, 1, 3, 6, 7, 8, 9, 10, 11, 13, 17, 18, 20, 22, 24, 25, 26, 28, 29, 30,
         31, 32, 33, 35, 36, 40, 41, 42, 44, 48, 49, 50, 52, 55, 56, 57, 58, 59,
         60, 62, 63, 67, 69, 72, 73, 75, 77, 79, 81, 82, 83, 84, 85, 86, 88, 89,
         90, 91, 93],
    66: [2, 4, 14, 15, 16, 19, 21, 23, 27, 34, 37, 38, 39, 43, 45, 46, 47, 51, 53,
         61, 64, 68, 70, 74, 76, 78, 80, 87, 92],
    20: [13, 36, 55], 33: [1, 10, 40, 85], 34: [2], 43: [92],
    57: [0, 30, 60, 79], 58: [22, 32, 69, 73], 56: [18, 82],
    77: [3, 7, 8, 9, 11, 24, 26, 28, 41, 42, 52, 62, 63, 75, 84, 86, 93],
    78: [4, 16, 27, 39, 46, 47, 51, 53, 64, 76, 87],
    81: [31], 3: [7, 26, 52, 62, 75, 84, 93],
    4: [27, 46, 47, 53, 64, 76], 22: [32], 69: [73], 70: [74], 86: [24, 28, 63],
}
EXCLUSIVE_CLASSES = [5, 12, 54, 65, 66, 71]
NUM_CLASSES = 94
NUM_CLASSES_PADDED = 128   # lane-dense class dim (multiple of 128)
_TB_MAX = 512              # B-tile cap: (tB,24,128) f32 intermediate fits v7x 64 MiB VMEM


def build_all_relationships(hd):
    """Transitive closure, identical to ClassificationModel._build_all_relationships."""
    def get_all_descendants(parent):
        descendants = set()
        if parent in hd:
            direct = hd[parent]
            descendants.update(direct)
            for child in direct:
                descendants.update(get_all_descendants(child))
        return descendants
    return {p: get_all_descendants(p) for p in hd}


ALL_RELATIONSHIPS = build_all_relationships(hierarchy_dict)
PARENTS = sorted(p for p, d in ALL_RELATIONSHIPS.items() if d)   # 18 real parent rows


def _round_up(a, m):
    return ((a + m - 1) // m) * m


# ----------------------------------------------------------------------------
# Fused kernel: base_model forward -> logits, then hierarchy-aware predict.
# ----------------------------------------------------------------------------
def fused_kernel(x_ref, mask_ref, wemb_ref, bemb_ref, wout_ref, bout_ref,
                 prop_ref, scat_ref, ispar_ref, excl_ref, logits_ref, probs_ref):
    # x_ref    : (tB, T*C)    bf16  row-major flatten of (B, T, C), B-tile
    # mask_ref : (tB, T*D)    bf16  padding mask repeated D times per timestep
    # wemb_ref : (T*C, T*D)   bf16  block-diagonal tiling of the (C, D) embedding weight
    # bemb_ref : (1, T*D)     f32
    # wout_ref : (T*D, Np)    bf16  flatten-Linear weight, class dim zero-padded to Np
    # bout_ref : (1, Np)      f32
    # prop_ref : (P_pad, Np)  bf16  additive mask: 0.0 where class is the parent itself
    #                               or a transitive descendant, -1e30 elsewhere
    # scat_ref : (P_pad, Np)  f32   one-hot: row i has 1.0 at column PARENTS[i]
    # ispar_ref: (1, Np)      f32   1.0 on parent columns
    # excl_ref : (1, Np)      f32   1.0 on mutually-exclusive class columns
    # logits_ref / probs_ref : (tB, Np) f32
    NEG = jnp.float32(-1e30)
    Np = logits_ref.shape[1]

    # ---- base_model forward: two lane-dense MXU matmuls, f32 accumulate ----
    h = jnp.dot(x_ref[...], wemb_ref[...], preferred_element_type=jnp.float32)
    h = jax.nn.gelu(h + bemb_ref[...])                       # (tB, T*D) f32 (EUP/VPU)
    # bf16 mask multiply (mask is 0/1 -> exact; halves VALU+DMA on v6e/v7x).
    # TODO(synk): on v5e keep this multiply in f32 (no bf16 VALU there).
    h = h.astype(jnp.bfloat16) * mask_ref[...]                # (tB, T*D) bf16
    logits = jnp.dot(h, wout_ref[...],
                     preferred_element_type=jnp.float32) + bout_ref[...]
    logits_ref[...] = logits                                  # unmasked lane-dense store

    # ---- predict: sigmoid + hierarchical max-propagation + exclusive WTA ----
    probs = jax.nn.sigmoid(logits)                            # (tB, Np) f32

    # Parent maxima over {parent} U transitive-descendants(parent): additive mask + max.
    # Only the 18 (padded to 24) real parent rows are materialized.
    prop_add = prop_ref[...].astype(jnp.float32)                            # (P_pad, Np)
    parent_max = jnp.max(probs[:, None, :] + prop_add[None, :, :], axis=2)  # (tB, P_pad)

    # Exact scatter of parent maxima back into their parent columns: each column has at
    # most one parent row, so one-hot multiply + sum over P is exact f32 (no MXU).
    scat = scat_ref[...]                                                    # (P_pad, Np)
    scattered = jnp.sum(parent_max[:, :, None] * scat[None, :, :], axis=1)  # (tB, Np)
    probs = jnp.where(ispar_ref[...] > 0, scattered, probs)

    # Exclusive classes: keep only the first (lowest-index) argmax, zero the rest.
    # Lowest column index == first entry of EXCLUSIVE_CLASSES (list is ascending),
    # matching torch.max argmax semantics.
    ecm = excl_ref[...]                                                     # (1, Np)
    masked = jnp.where(ecm > 0, probs, NEG)                                 # (tB, Np)
    mval = jnp.max(masked, axis=1, keepdims=True)                           # (tB, 1)
    is_max = jnp.logical_and(masked >= mval, ecm > 0)
    col = jax.lax.broadcasted_iota(jnp.int32, probs.shape, 1)
    first = jnp.min(jnp.where(is_max, col, Np), axis=1, keepdims=True)      # (tB, 1)
    winner = (col == first).astype(jnp.float32)                             # (tB, Np)
    probs_ref[...] = probs * jnp.where(ecm > 0, winner, 1.0)


# ----------------------------------------------------------------------------
# Module wrapper: weight-derived tensors built once; per-call path jitted.
# ----------------------------------------------------------------------------
class ClassificationModelPallas:
    """forward()+predict() of ClassificationModel with a synthetic Linear/GELU base_model."""

    def __init__(self, wemb, bemb, wout3, bout):
        wemb = np.asarray(wemb, np.float32)     # (C, D)
        bemb = np.asarray(bemb, np.float32)     # (1, D)
        wout3 = np.asarray(wout3, np.float32)   # (T, D, N)
        bout = np.asarray(bout, np.float32)     # (1, N)

        self.C, self.D = wemb.shape
        self.T, _, self.N = wout3.shape
        T, C, D, N = self.T, self.C, self.D, self.N
        Np = NUM_CLASSES_PADDED

        # ---- one-time layout plumbing (host numpy, no per-call cost) ----
        self.wemb_bd = jnp.asarray(
            np.kron(np.eye(T, dtype=np.float32), wemb), jnp.bfloat16)        # (T*C, T*D)
        self.bemb_bd = jnp.asarray(np.tile(bemb.reshape(1, D), (1, T)))      # (1, T*D)
        wout_pad = np.zeros((T * D, Np), np.float32)
        wout_pad[:, :N] = wout3.reshape(T * D, N)
        self.wout_pad = jnp.asarray(wout_pad, jnp.bfloat16)                  # (T*D, Np)
        bout_pad = np.zeros((1, Np), np.float32)
        bout_pad[:, :N] = bout.reshape(1, N)
        self.bout_pad = jnp.asarray(bout_pad)                                # (1, Np)

        # ---- hierarchy masks: P_pad parent rows only (additive bf16 mask) ----
        P = len(PARENTS)
        P_pad = _round_up(P, 8)
        prop_add = np.full((P_pad, Np), -1e30, np.float32)
        scat = np.zeros((P_pad, Np), np.float32)
        ispar = np.zeros((1, Np), np.float32)
        for i, p in enumerate(PARENTS):
            prop_add[i, p] = 0.0
            for c in ALL_RELATIONSHIPS[p]:
                prop_add[i, c] = 0.0
            scat[i, p] = 1.0
            ispar[0, p] = 1.0
        ecm = np.zeros((1, Np), np.float32)
        ecm[0, EXCLUSIVE_CLASSES] = 1.0
        self.P_pad = P_pad
        self.prop_add = jnp.asarray(prop_add, jnp.bfloat16)                  # (P_pad, Np)
        self.scat = jnp.asarray(scat)                                        # (P_pad, Np)
        self.ispar = jnp.asarray(ispar)                                      # (1, Np)
        self.ecm = jnp.asarray(ecm)                                          # (1, Np)

        self._jit_fn = jax.jit(self._forward_predict)

    # per-call path (runs fully under jit: flatten/pad ops fuse with the launch)
    def _forward_predict(self, x, padding_mask):
        B, T, C = x.shape
        D, Np, N = self.D, NUM_CLASSES_PADDED, self.N

        x_flat = x.reshape(B, T * C).astype(jnp.bfloat16)                    # (B, T*C)
        mask_flat = jnp.repeat(padding_mask.astype(jnp.bfloat16), D, axis=1)  # (B, T*D)

        # B-grid: pad batch to a sublane multiple and tile (parallel -> megacore).
        tB = min(_round_up(B, 8), _TB_MAX)
        B_pad = _round_up(B, tB)
        if B_pad != B:
            x_flat = jnp.pad(x_flat, ((0, B_pad - B), (0, 0)))
            mask_flat = jnp.pad(mask_flat, ((0, B_pad - B), (0, 0)))

        const = lambda b: (0, 0)   # resident weights / masks: constant block index
        logits_pad, probs_pad = pl.pallas_call(
            fused_kernel,
            out_shape=(jax.ShapeDtypeStruct((B_pad, Np), jnp.float32),
                       jax.ShapeDtypeStruct((B_pad, Np), jnp.float32)),
            grid=(B_pad // tB,),
            in_specs=[
                pl.BlockSpec((tB, T * C), lambda b: (b, 0)),      # x
                pl.BlockSpec((tB, T * D), lambda b: (b, 0)),      # padding mask
                pl.BlockSpec((T * C, T * D), const),              # wemb (block-diag)
                pl.BlockSpec((1, T * D), const),                  # bemb
                pl.BlockSpec((T * D, Np), const),                 # wout
                pl.BlockSpec((1, Np), const),                     # bout
                pl.BlockSpec((self.P_pad, Np), const),            # prop_add
                pl.BlockSpec((self.P_pad, Np), const),            # scatter one-hot
                pl.BlockSpec((1, Np), const),                     # is-parent columns
                pl.BlockSpec((1, Np), const),                     # exclusive columns
            ],
            out_specs=(pl.BlockSpec((tB, Np), lambda b: (b, 0)),
                       pl.BlockSpec((tB, Np), lambda b: (b, 0))),
            compiler_params=pltpu.CompilerParams(
                dimension_semantics=("parallel",)),
        )(x_flat, mask_flat, self.wemb_bd, self.bemb_bd, self.wout_pad,
          self.bout_pad, self.prop_add, self.scat, self.ispar, self.ecm)

        return logits_pad[:B, :N], probs_pad[:B, :N]

    def predict(self, x, padding_mask):
        """Fused forward() + predict(). Returns (logits, probs), both (B, NUM_CLASSES)."""
        return self._jit_fn(x, padding_mask)


# ----------------------------------------------------------------------------
# Pure-numpy references (match the PyTorch semantics)
# ----------------------------------------------------------------------------
def _gelu_tanh(x):
    return 0.5 * x * (1.0 + np.tanh(np.sqrt(2.0 / np.pi) * (x + 0.044715 * x ** 3)))


def forward_reference(x, mask, wemb, bemb, wout3, bout):
    h = np.einsum("btc,cd->btd", x, wemb) + bemb[0][None, None, :]   # (B, T, D)
    h = _gelu_tanh(h)
    h = h * mask[..., None]
    return np.einsum("btd,tdn->bn", h, wout3) + bout                 # (B, N)


def predict_reference(logits):
    """Sequential loop exactly mirroring ClassificationModel.predict."""
    probs = 1.0 / (1.0 + np.exp(-logits.astype(np.float64)))
    for parent, descendants in ALL_RELATIONSHIPS.items():
        idx = list(descendants)
        if idx:
            cmax = probs[:, idx].max(axis=1)
            probs[:, parent] = np.maximum(probs[:, parent], cmax)
    excl = probs[:, EXCLUSIVE_CLASSES]
    mi = excl.argmax(axis=1)
    mask = np.zeros_like(excl)
    mask[np.arange(excl.shape[0]), mi] = 1.0
    probs[:, EXCLUSIVE_CLASSES] = excl * mask
    return probs


if __name__ == "__main__":
    B, T, C, D, N = 2, 8, 4, 32, NUM_CLASSES
    # Tie-break in the kernel assumes exclusive class list is ascending (torch argmax
    # returns the first max in list order == lowest column index).
    assert EXCLUSIVE_CLASSES == sorted(EXCLUSIVE_CLASSES)

    key = jax.random.PRNGKey(0)
    k1, k2, k3, k4 = jax.random.split(key, 4)

    x = jax.random.normal(k1, (B, T, C), jnp.float32)
    lengths = jnp.array([T, 5], jnp.int32)
    padding_mask = (jnp.arange(T)[None, :] < lengths[:, None]).astype(jnp.float32)

    # Deterministic synthetic base_model parameters (stand-in for the injected base_model).
    # TODO(synk): the real base_model is injected at runtime in the PyTorch module; this
    # Linear->GELU->mask->Linear head is a faithful small stand-in, not the actual net.
    wemb = jax.random.normal(k2, (C, D), jnp.float32) * 0.1
    bemb = jnp.zeros((1, D), jnp.float32)
    wout3 = jax.random.normal(k3, (T, D, N), jnp.float32) * 0.1   # == Linear(T*D, N) reshaped
    bout = jax.random.normal(k4, (1, N), jnp.float32) * 0.1

    model = ClassificationModelPallas(wemb, bemb, wout3, bout)

    # Fused forward() + predict() in one jitted dispatch / one pallas_call.
    logits, probs = model.predict(x, padding_mask)
    logits, probs = jax.block_until_ready((logits, probs))

    logits_np = np.asarray(logits)
    probs_np = np.asarray(probs)
    logits_ref = forward_reference(np.asarray(x), np.asarray(padding_mask),
                                   np.asarray(wemb), np.asarray(bemb),
                                   np.asarray(wout3), np.asarray(bout))
    probs_ref = predict_reference(logits_np)

    assert logits_np.shape == (B, N) and probs_np.shape == (B, N)
    assert np.allclose(logits_np, logits_ref, rtol=5e-2, atol=5e-2)
    assert np.allclose(probs_np, probs_ref, rtol=5e-2, atol=5e-2)

    print("KERNEL_OK")
</pallas_src>

<mosaic_0001>
module attributes {stable_mosaic.version = 11 : i64} {
  func.func @fused_kernel(%arg0: i32, %arg1: memref<8x32xbf16, #tpu.memory_space<vmem>>, %arg2: memref<8x256xbf16, #tpu.memory_space<vmem>>, %arg3: memref<32x256xbf16, #tpu.memory_space<vmem>>, %arg4: memref<1x256xf32, #tpu.memory_space<vmem>>, %arg5: memref<256x128xbf16, #tpu.memory_space<vmem>>, %arg6: memref<1x128xf32, #tpu.memory_space<vmem>>, %arg7: memref<24x128xbf16, #tpu.memory_space<vmem>>, %arg8: memref<24x128xf32, #tpu.memory_space<vmem>>, %arg9: memref<1x128xf32, #tpu.memory_space<vmem>>, %arg10: memref<1x128xf32, #tpu.memory_space<vmem>>, %arg11: memref<8x128xf32, #tpu.memory_space<vmem>>, %arg12: memref<8x128xf32, #tpu.memory_space<vmem>>) attributes {dimension_semantics = [#tpu.dimension_semantics<parallel>], iteration_bounds = array<i64: 1>, scalar_prefetch = 0 : i64, scratch_operands = 0 : i64, tpu.core_type = #tpu.core_type<tc>, window_params = [{transform_indices = @transform_0, window_bounds = array<i64: 8, 32>}, {transform_indices = @transform_1, window_bounds = array<i64: 8, 256>}, {pipeline_mode = #tpu.pipeline_mode<synchronous>, transform_indices = @transform_2, window_bounds = array<i64: 32, 256>}, {pipeline_mode = #tpu.pipeline_mode<synchronous>, transform_indices = @transform_3, window_bounds = array<i64: 1, 256>}, {pipeline_mode = #tpu.pipeline_mode<synchronous>, transform_indices = @transform_4, window_bounds = array<i64: 256, 128>}, {pipeline_mode = #tpu.pipeline_mode<synchronous>, transform_indices = @transform_5, window_bounds = array<i64: 1, 128>}, {pipeline_mode = #tpu.pipeline_mode<synchronous>, transform_indices = @transform_6, window_bounds = array<i64: 24, 128>}, {pipeline_mode = #tpu.pipeline_mode<synchronous>, transform_indices = @transform_7, window_bounds = array<i64: 24, 128>}, {pipeline_mode = #tpu.pipeline_mode<synchronous>, transform_indices = @transform_8, window_bounds = array<i64: 1, 128>}, {pipeline_mode = #tpu.pipeline_mode<synchronous>, transform_indices = @transform_9, window_bounds = array<i64: 1, 128>}, {transform_indices = @transform_10, window_bounds = array<i64: 8, 128>}, {transform_indices = @transform_11, window_bounds = array<i64: 8, 128>}]} {
    %c0 = arith.constant 0 : index
    %c0_0 = arith.constant 0 : index
    %0 = vector.load %arg1[%c0, %c0_0] : memref<8x32xbf16, #tpu.memory_space<vmem>>, vector<8x32xbf16>
    %c0_1 = arith.constant 0 : index
    %c0_2 = arith.constant 0 : index
    %1 = vector.load %arg3[%c0_1, %c0_2] : memref<32x256xbf16, #tpu.memory_space<vmem>>, vector<32x256xbf16>
    %cst = arith.constant dense<0.000000e+00> : vector<8x256xf32>
    %2 = tpu.matmul %0, %1, %cst {dimension_numbers = #tpu.dot_dimension_numbers<[1], [0], [0], [1], [0, 0, 1, 1], [], []>} : vector<8x32xbf16>, vector<32x256xbf16>, vector<8x256xf32> -> vector<8x256xf32>
    %c0_3 = arith.constant 0 : index
    %c0_4 = arith.constant 0 : index
    %3 = vector.load %arg4[%c0_3, %c0_4] : memref<1x256xf32, #tpu.memory_space<vmem>>, vector<1x256xf32>
    %4 = vector.broadcast %3 : vector<1x256xf32> to vector<8x256xf32>
    %5 = arith.addf %2, %4 : vector<8x256xf32>
    %6 = arith.mulf %5, %5 : vector<8x256xf32>
    %7 = arith.mulf %5, %6 : vector<8x256xf32>
    %cst_5 = arith.constant 4.471500e-02 : f32
    %8 = vector.broadcast %cst_5 : f32 to vector<8x256xf32>
    %9 = arith.mulf %8, %7 : vector<8x256xf32>
    %10 = arith.addf %5, %9 : vector<8x256xf32>
    %cst_6 = arith.constant 0.797884583 : f32
    %11 = vector.broadcast %cst_6 : f32 to vector<8x256xf32>
    %12 = arith.mulf %11, %10 : vector<8x256xf32>
    %13 = math.tanh %12 : vector<8x256xf32>
    %cst_7 = arith.constant 1.000000e+00 : f32
    %14 = vector.broadcast %cst_7 : f32 to vector<8x256xf32>
    %15 = arith.addf %14, %13 : vector<8x256xf32>
    %cst_8 = arith.constant 5.000000e-01 : f32
    %16 = vector.broadcast %cst_8 : f32 to vector<8x256xf32>
    %17 = arith.mulf %16, %15 : vector<8x256xf32>
    %18 = arith.mulf %5, %17 : vector<8x256xf32>
    %19 = arith.truncf %18 : vector<8x256xf32> to vector<8x256xbf16>
    %c0_9 = arith.constant 0 : index
    %c0_10 = arith.constant 0 : index
    %20 = vector.load %arg2[%c0_9, %c0_10] : memref<8x256xbf16, #tpu.memory_space<vmem>>, vector<8x256xbf16>
    %21 = arith.mulf %19, %20 : vector<8x256xbf16>
    %c0_11 = arith.constant 0 : index
    %c0_12 = arith.constant 0 : index
    %22 = vector.load %arg5[%c0_11, %c0_12] : memref<256x128xbf16, #tpu.memory_space<vmem>>, vector<256x128xbf16>
    %cst_13 = arith.constant dense<0.000000e+00> : vector<8x128xf32>
    %23 = tpu.matmul %21, %22, %cst_13 {dimension_numbers = #tpu.dot_dimension_numbers<[1], [0], [0], [1], [0, 0, 1, 1], [], []>} : vector<8x256xbf16>, vector<256x128xbf16>, vector<8x128xf32> -> vector<8x128xf32>
    %c0_14 = arith.constant 0 : index
    %c0_15 = arith.constant 0 : index
    %24 = vector.load %arg6[%c0_14, %c0_15] : memref<1x128xf32, #tpu.memory_space<vmem>>, vector<1x128xf32>
    %25 = vector.broadcast %24 : vector<1x128xf32> to vector<8x128xf32>
    %26 = arith.addf %23, %25 : vector<8x128xf32>
    %c0_16 = arith.constant 0 : index
    %c0_17 = arith.constant 0 : index
    %27 = vector.load %arg11[%c0_16, %c0_17] : memref<8x128xf32, #tpu.memory_space<vmem>>, vector<8x128xf32>
    tpu.vector_store %arg11[%c0_16, %c0_17], %26 {strides = array<i32>} : memref<8x128xf32, #tpu.memory_space<vmem>>, vector<8x128xf32>,
    %28 = arith.negf %26 : vector<8x128xf32>
    %29 = math.exp %28 : vector<8x128xf32>
    %cst_18 = arith.constant 1.000000e+00 : f32
    %30 = vector.broadcast %cst_18 : f32 to vector<8x128xf32>
    %31 = arith.addf %30, %29 : vector<8x128xf32>
    %32 = arith.divf %30, %31 : vector<8x128xf32>
    %c0_19 = arith.constant 0 : index
    %c0_20 = arith.constant 0 : index
    %33 = vector.load %arg7[%c0_19, %c0_20] : memref<24x128xbf16, #tpu.memory_space<vmem>>, vector<24x128xbf16>
    %34 = arith.extf %33 : vector<24x128xbf16> to vector<24x128xf32>
    %35 = vector.shape_cast %32 : vector<8x128xf32> to vector<8x1x128xf32>
    %36 = vector.shape_cast %34 : vector<24x128xf32> to vector<1x24x128xf32>
    %37 = vector.broadcast %35 : vector<8x1x128xf32> to vector<8x24x128xf32>
    %38 = vector.broadcast %36 : vector<1x24x128xf32> to vector<8x24x128xf32>
    %39 = arith.addf %37, %38 : vector<8x24x128xf32>
    %cst_21 = arith.constant dense<0xFF800000> : vector<8x24xf32>
    %40 = vector.multi_reduction <maximumf>, %39, %cst_21 [2] : vector<8x24x128xf32> to vector<8x24xf32>
    %c0_22 = arith.constant 0 : index
    %c0_23 = arith.constant 0 : index
    %41 = vector.load %arg8[%c0_22, %c0_23] : memref<24x128xf32, #tpu.memory_space<vmem>>, vector<24x128xf32>
    %42 = vector.shape_cast %40 : vector<8x24xf32> to vector<8x24x1xf32>
    %43 = vector.shape_cast %41 : vector<24x128xf32> to vector<1x24x128xf32>
    %44 = vector.broadcast %42 : vector<8x24x1xf32> to vector<8x24x128xf32>
    %45 = vector.broadcast %43 : vector<1x24x128xf32> to vector<8x24x128xf32>
    %46 = arith.mulf %44, %45 : vector<8x24x128xf32>
    %cst_24 = arith.constant dense<0.000000e+00> : vector<8x128xf32>
    %47 = vector.multi_reduction <add>, %46, %cst_24 [1] : vector<8x24x128xf32> to vector<8x128xf32>
    %c0_25 = arith.constant 0 : index
    %c0_26 = arith.constant 0 : index
    %48 = vector.load %arg9[%c0_25, %c0_26] : memref<1x128xf32, #tpu.memory_space<vmem>>, vector<1x128xf32>
    %cst_27 = arith.constant 0.000000e+00 : f32
    %49 = vector.broadcast %cst_27 : f32 to vector<1x128xf32>
    %50 = arith.cmpf ogt, %48, %49 : vector<1x128xf32>
    %51 = vector.shape_cast %50 : vector<1x128xi1> to vector<1x128xi1>
    %52 = vector.broadcast %51 : vector<1x128xi1> to vector<8x128xi1>
    %53 = arith.select %52, %47, %32 : vector<8x128xi1>, vector<8x128xf32>
    %c0_28 = arith.constant 0 : index
    %c0_29 = arith.constant 0 : index
    %54 = vector.load %arg10[%c0_28, %c0_29] : memref<1x128xf32, #tpu.memory_space<vmem>>, vector<1x128xf32>
    %cst_30 = arith.constant 0.000000e+00 : f32
    %55 = vector.broadcast %cst_30 : f32 to vector<1x128xf32>
    %56 = arith.cmpf ogt, %54, %55 : vector<1x128xf32>
    %cst_31 = arith.constant -1.000000e+30 : f32
    %57 = vector.shape_cast %56 : vector<1x128xi1> to vector<1x128xi1>
    %58 = vector.broadcast %57 : vector<1x128xi1> to vector<8x128xi1>
    %59 = vector.broadcast %cst_31 : f32 to vector<8x128xf32>
    %60 = arith.select %58, %53, %59 : vector<8x128xi1>, vector<8x128xf32>
    %cst_32 = arith.constant dense<0xFF800000> : vector<8xf32>
    %61 = vector.multi_reduction <maximumf>, %60, %cst_32 [1] : vector<8x128xf32> to vector<8xf32>
    %62 = vector.shape_cast %61 : vector<8xf32> to vector<8x1xf32>
    %63 = vector.broadcast %62 : vector<8x1xf32> to vector<8x128xf32>
    %64 = arith.cmpf oge, %60, %63 : vector<8x128xf32>
    %cst_33 = arith.constant 0.000000e+00 : f32
    %65 = vector.broadcast %cst_33 : f32 to vector<1x128xf32>
    %66 = arith.cmpf ogt, %54, %65 : vector<1x128xf32>
    %67 = vector.broadcast %66 : vector<1x128xi1> to vector<8x128xi1>
    %68 = arith.andi %64, %67 : vector<8x128xi1>
    %69 = tpu.iota {dimensions = array<i32: 1>} : vector<8x128xi32>
    %c128_i32 = arith.constant 128 : i32
    %70 = vector.broadcast %c128_i32 : i32 to vector<8x128xi32>
    %71 = arith.select %68, %69, %70 : vector<8x128xi1>, vector<8x128xi32>
    %cst_34 = arith.constant dense<2147483647> : vector<8xi32>
    %72 = vector.multi_reduction <minsi>, %71, %cst_34 [1] : vector<8x128xi32> to vector<8xi32>
    %73 = vector.shape_cast %72 : vector<8xi32> to vector<8x1xi32>
    %74 = vector.broadcast %73 : vector<8x1xi32> to vector<8x128xi32>
    %75 = arith.cmpi eq, %69, %74 : vector<8x128xi32>
    %76 = arith.extui %75 : vector<8x128xi1> to vector<8x128xi32>
    %77 = arith.sitofp %76 : vector<8x128xi32> to vector<8x128xf32>
    %cst_35 = arith.constant 0.000000e+00 : f32
    %78 = vector.broadcast %cst_35 : f32 to vector<1x128xf32>
    %79 = arith.cmpf ogt, %54, %78 : vector<1x128xf32>
    %cst_36 = arith.constant 1.000000e+00 : f32
    %80 = vector.shape_cast %79 : vector<1x128xi1> to vector<1x128xi1>
    %81 = vector.broadcast %80 : vector<1x128xi1> to vector<8x128xi1>
    %82 = vector.broadcast %cst_36 : f32 to vector<8x128xf32>
    %83 = arith.select %81, %77, %82 : vector<8x128xi1>, vector<8x128xf32>
    %84 = arith.mulf %53, %83 : vector<8x128xf32>
    %c0_37 = arith.constant 0 : index
    %c0_38 = arith.constant 0 : index
    %85 = vector.load %arg12[%c0_37, %c0_38] : memref<8x128xf32, #tpu.memory_space<vmem>>, vector<8x128xf32>
    tpu.vector_store %arg12[%c0_37, %c0_38], %84 {strides = array<i32>} : memref<8x128xf32, #tpu.memory_space<vmem>>, vector<8x128xf32>,
    return
  }
  func.func @transform_0(%arg0: i32) -> (i32, i32) {
    %c0_i32 = arith.constant 0 : i32
    %c0_i32_0 = arith.constant 0 : i32
    return %arg0, %c0_i32 : i32, i32
  }
  func.func @transform_1(%arg0: i32) -> (i32, i32) {
    %c0_i32 = arith.constant 0 : i32
    %c0_i32_0 = arith.constant 0 : i32
    return %arg0, %c0_i32 : i32, i32
  }
  func.func @transform_2(%arg0: i32) -> (i32, i32) {
    %c0_i32 = arith.constant 0 : i32
    %c0_i32_0 = arith.constant 0 : i32
    %c0_i32_1 = arith.constant 0 : i32
    return %c0_i32, %c0_i32_0 : i32, i32
  }
  func.func @transform_3(%arg0: i32) -> (i32, i32) {
    %c0_i32 = arith.constant 0 : i32
    %c0_i32_0 = arith.constant 0 : i32
    %c0_i32_1 = arith.constant 0 : i32
    return %c0_i32, %c0_i32_0 : i32, i32
  }
  func.func @transform_4(%arg0: i32) -> (i32, i32) {
    %c0_i32 = arith.constant 0 : i32
    %c0_i32_0 = arith.constant 0 : i32
    %c0_i32_1 = arith.constant 0 : i32
    return %c0_i32, %c0_i32_0 : i32, i32
  }
  func.func @transform_5(%arg0: i32) -> (i32, i32) {
    %c0_i32 = arith.constant 0 : i32
    %c0_i32_0 = arith.constant 0 : i32
    %c0_i32_1 = arith.constant 0 : i32
    return %c0_i32, %c0_i32_0 : i32, i32
  }
  func.func @transform_6(%arg0: i32) -> (i32, i32) {
    %c0_i32 = arith.constant 0 : i32
    %c0_i32_0 = arith.constant 0 : i32
    %c0_i32_1 = arith.constant 0 : i32
    return %c0_i32, %c0_i32_0 : i32, i32
  }
  func.func @transform_7(%arg0: i32) -> (i32, i32) {
    %c0_i32 = arith.constant 0 : i32
    %c0_i32_0 = arith.constant 0 : i32
    %c0_i32_1 = arith.constant 0 : i32
    return %c0_i32, %c0_i32_0 : i32, i32
  }
  func.func @transform_8(%arg0: i32) -> (i32, i32) {
    %c0_i32 = arith.constant 0 : i32
    %c0_i32_0 = arith.constant 0 : i32
    %c0_i32_1 = arith.constant 0 : i32
    return %c0_i32, %c0_i32_0 : i32, i32
  }
  func.func @transform_9(%arg0: i32) -> (i32, i32) {
    %c0_i32 = arith.constant 0 : i32
    %c0_i32_0 = arith.constant 0 : i32
    %c0_i32_1 = arith.constant 0 : i32
    return %c0_i32, %c0_i32_0 : i32, i32
  }
  func.func @transform_10(%arg0: i32) -> (i32, i32) {
    %c0_i32 = arith.constant 0 : i32
    %c0_i32_0 = arith.constant 0 : i32
    return %arg0, %c0_i32 : i32, i32
  }
  func.func @transform_11(%arg0: i32) -> (i32, i32) {
    %c0_i32 = arith.constant 0 : i32
    %c0_i32_0 = arith.constant 0 : i32
    return %arg0, %c0_i32 : i32, i32
  }
}

</mosaic_0001>

<llo_original>
// kernel: _forward_predict.1
$region0: #{_forward_predict.1}
  #allocation0 [shape = 'u32[]', space=smem, size = 0x4, offset = 0x4, fixed_abs, tag = 'smem constant byte address 0x4 - core index']
  #allocation1 [shape = 'u32[144,128]{1,0:T(1,128)}', space=vmem, size = 0x12000, scoped, tag = 'internal scratch']
  %s0 = inlined_call_operand.vmem [shape: bf16[8,32], index: 0, kind: input, shape index: {}]
  %s1 = inlined_call_operand.vmem [shape: bf16[8,256], index: 1, kind: input, shape index: {}]
  %s2 = inlined_call_operand.vmem [shape: bf16[32,256], index: 2, kind: input, shape index: {}]
  %s3 = inlined_call_operand.vmem [shape: f32[1,256], index: 3, kind: input, shape index: {}]
  %s4 = inlined_call_operand.hbm [shape: bf16[256,128], index: 4, kind: input, shape index: {}]
  %s5 = inlined_call_operand.vmem [shape: f32[1,128], index: 5, kind: input, shape index: {}]
  %s6 = inlined_call_operand.vmem [shape: bf16[24,128], index: 6, kind: input, shape index: {}]
  %s7 = inlined_call_operand.vmem [shape: f32[24,128], index: 7, kind: input, shape index: {}]
  %s8 = inlined_call_operand.vmem [shape: f32[1,128], index: 8, kind: input, shape index: {}]
  %s9 = inlined_call_operand.vmem [shape: f32[1,128], index: 9, kind: input, shape index: {}]
  %s10 = inlined_call_operand.vmem [shape: f32[8,128], index: 10, kind: output, shape index: {0}]
  %s11 = inlined_call_operand.vmem [shape: f32[8,128], index: 11, kind: output, shape index: {1}]
  %12 = xla_tuple %s10, %s11
  %s13 = sld [smem:[#allocation0]]
  $region62: #{_forward_predict.1} parent=0
    _
  %s15 = ssub.s32 1, %s13
  %s16 = scalar_select 0, %s15, %s13
  $region1: #{_forward_predict.1} parent=0
    #allocation2 [shape = 'u8[65536]{0}', space=vmem, size = 0x10000, scoped, tag = 'input window, operand 4, single buffered']
    #allocation3 [shape = 's32[1]{0}', space=sflag, size = 0x4, scoped, tag = 'scoped memory for _forward_predict.1']
    %17 = vsyncpa [#allocation3], 0
    // Predicated region
    $region2: #{_forward_predict.1} parent=1 // pred_check
      _
    $region3: #{_forward_predict.1} parent=1 // pred_check_branch
      %19 = sbr.rel (0) target = $region5
    $region4: #{_forward_predict.1} parent=1 // pred_region
      _
    $region5: #{_forward_predict.1} parent=1 // pred_fallthru
      _
    // Predicated region
    $region6: #{_forward_predict.1} parent=1 // pred_check
      _
    $region7: #{_forward_predict.1} parent=1 // pred_check_branch
      %21 = sbr.rel (0) target = $region9
    $region8: #{_forward_predict.1} parent=1 // pred_region
      _
    $region9: #{_forward_predict.1} parent=1 // pred_fallthru
      _
    // Predicated region
    $region10: #{_forward_predict.1} parent=1 // pred_check
      _
    $region11: #{_forward_predict.1} parent=1 // pred_check_branch
      %23 = sbr.rel (0) target = $region13
    $region12: #{_forward_predict.1} parent=1 // pred_region
      _
    $region13: #{_forward_predict.1} parent=1 // pred_fallthru
      _
    // Predicated region
    $region14: #{_forward_predict.1} parent=1 // pred_check
      _
    $region15: #{_forward_predict.1} parent=1 // pred_check_branch
      %25 = sbr.rel (0) target = $region17
    $region16: #{_forward_predict.1} parent=1 // pred_region
      _
    $region17: #{_forward_predict.1} parent=1 // pred_fallthru
      _
    // Predicated region
    $region18: #{_forward_predict.1} parent=1 // pred_check
      _
    $region19: #{_forward_predict.1} parent=1 // pred_check_branch
      %27 = sbr.rel (0) target = $region21
    $region20: #{_forward_predict.1} parent=1 // pred_region
      %s29 = ssub.s32 2048, 2048
      %30 = vsyncadd [#allocation3], %s29
      %s31 = sshll.u32 [#allocation2], 4
      %s32 = int_to_ptr.vmem [resolvable:$true] %s31
      %37 = dma.hbm_to_vmem [thread:$0]  %s4, 2048, %s32, [#allocation3], 64, 64, 4
    $region21: #{_forward_predict.1} parent=1 // pred_fallthru
      _
    // Predicated region
    $region22: #{_forward_predict.1} parent=1 // pred_check
      _
    $region23: #{_forward_predict.1} parent=1 // pred_check_branch
      %39 = sbr.rel (0) target = $region25
    $region24: #{_forward_predict.1} parent=1 // pred_region
      _
    $region25: #{_forward_predict.1} parent=1 // pred_fallthru
      _
    // Predicated region
    $region26: #{_forward_predict.1} parent=1 // pred_check
      _
    $region27: #{_forward_predict.1} parent=1 // pred_check_branch
      %41 = sbr.rel (0) target = $region29
    $region28: #{_forward_predict.1} parent=1 // pred_region
      _
    $region29: #{_forward_predict.1} parent=1 // pred_fallthru
      _
    // Predicated region
    $region30: #{_forward_predict.1} parent=1 // pred_check
      _
    $region31: #{_forward_predict.1} parent=1 // pred_check_branch
      %43 = sbr.rel (0) target = $region33
    $region32: #{_forward_predict.1} parent=1 // pred_region
      _
    $region33: #{_forward_predict.1} parent=1 // pred_fallthru
      _
    // Predicated region
    $region34: #{_forward_predict.1} parent=1 // pred_check
      _
    $region35: #{_forward_predict.1} parent=1 // pred_check_branch
      %45 = sbr.rel (0) target = $region37
    $region36: #{_forward_predict.1} parent=1 // pred_region
      _
    $region37: #{_forward_predict.1} parent=1 // pred_fallthru
      _
    // Predicated region
    $region38: #{_forward_predict.1} parent=1 // pred_check
      _
    $region39: #{_forward_predict.1} parent=1 // pred_check_branch
      %47 = sbr.rel (0) target = $region41
    $region40: #{_forward_predict.1} parent=1 // pred_region
      _
    $region41: #{_forward_predict.1} parent=1 // pred_fallthru
      _
    // Predicated region
    $region42: #{_forward_predict.1} parent=1 // pred_check
      _
    $region43: #{_forward_predict.1} parent=1 // pred_check_branch
      %49 = sbr.rel (0) target = $region45
    $region44: #{_forward_predict.1} parent=1 // pred_region
      %50 = dma.done [#allocation3], 2048
    $region45: #{_forward_predict.1} parent=1 // pred_fallthru
      _
    %v52 = vld [vmem:[%s0] sm:$0xf]
    %v53 = vld [vmem:[%s2] sm:$0xff]
    %v54 = vld [vmem:[%s2 + $0x8] sm:$0xff]
    %v55 = vld [vmem:[%s2 + $0x10] sm:$0xff]
    %v56 = vld [vmem:[%s2 + $0x18] sm:$0xff]
    %v57 = vld [vmem:[%s3] sm:$0x3]
    %v59 = vlaneseq
    %v60 = vshrl.u32 %v59, 7
    %v61 = vsub.s32 0, %v60
    %v62 = vrot.slane %v57, %v61
    %v63 = vlaneseq
    %v64 = vshrl.u32 %v63, 7
    %v65 = vsub.s32 1, %v64
    %v66 = vrot.slane %v57, %v65
    %v73 = vunpack.c.l.b16 %v53
    %v74 = vunpack.c.h.b16 %v53
    %v75 = vunpack.c.l.b16 %v54
    %v76 = vunpack.c.h.b16 %v54
    %v77 = vunpack.c.l.b16 %v55
    %v78 = vunpack.c.h.b16 %v55
    %v79 = vunpack.c.l.b16 %v56
    %v80 = vunpack.c.h.b16 %v56
    %v81 = vpack.c.b16 %v75, %v73
    %v82 = vpack.c.b16 %v76, %v74
    %v83 = vpack.c.b16 %v79, %v77
    %v84 = vpack.c.b16 %v80, %v78
    %vm89 = vcmask 261120
    %v91 = vsel %vm89, %v52, 0
    %93 = vmatprep.subr.bf16.mxu0 0
    %94 = vmatpush1.bf16.msra.mxu0 0
    %95 = vmatprep.subr.bf16.mxu0 0
    %96 = vmatpush1.bf16.msra.mxu0 0
    %97 = vmatprep.subr.bf16.mxu0 0
    %98 = vmatpush1.bf16.msra.mxu0 0
    %99 = vmatprep.subr.bf16.mxu0 0
    %100 = vmatpush1.bf16.msra.mxu0 0
    %101 = vmatprep.subr.bf16.mxu0 0
    %102 = vmatpush1.bf16.msra.mxu0 0
    %103 = vmatprep.subr.bf16.mxu0 0
    %104 = vmatpush1.bf16.msra.mxu0 0
    %105 = vmatprep.subr.bf16.mxu0 %v84
    %106 = vmatpush1.bf16.msra.mxu0 %v83
    %107 = vmatprep.subr.bf16.mxu0 %v82
    %108 = vmatpush1.bf16.msra.mxu0 %v81
    %109 = vmatprep.subr.bf16.mxu0 0
    %110 = vmatpush2.bf16.msra.mxu0 0
    %111 = vmatprep.subr.bf16.mxu0 0
    %112 = vmatpush2.bf16.msra.mxu0 0
    %113 = vmatprep.subr.bf16.mxu0 0
    %114 = vmatpush2.bf16.msra.mxu0 0
    %115 = vmatprep.subr.bf16.mxu0 0
    %116 = vmatpush2.bf16.msra.mxu0 0
    %117 = vmatprep.subr.bf16.mxu0 0
    %118 = vmatpush2.bf16.msra.mxu0 0
    %119 = vmatprep.subr.bf16.mxu0 0
    %120 = vmatpush2.bf16.msra.mxu0 0
    %121 = vmatprep.subr.bf16.mxu0 0
    %122 = vmatpush2.bf16.msra.mxu0 0
    %123 = vmatprep.subr.bf16.mxu0 0
    %124 = vmatpush2.bf16.msra.mxu0 0
    %125 = vmatprep.mubr.bf16.mxu0 0
    %126 = vmatmul.mubr.bf16.gmra.mxu0 %v91
    %v127 = vpop.f32.mrf.mxu0
    %v128 = vadd.f32 %v62, %v127
    %v129 = vpop.f32.mrf.mxu0
    %v130 = vadd.f32 %v66, %v129
    %v131 = vpop.f32.mrf.mxu0
    %v132 = vpop.f32.mrf.mxu0
    %133 = vdwg.mxu0
    %v134 = vmul.f32 %v128, %v128
    %v135 = vmul.f32 %v130, %v130
    %v136 = vmul.f32 %v128, %v134
    %v137 = vmul.f32 %v130, %v135
    %v138 = vmul.f32 %v136, 0.044715
    %v139 = vmul.f32 %v137, 0.044715
    %v140 = vadd.f32 %v128, %v138
    %v141 = vadd.f32 %v130, %v139
    %v142 = vmul.f32 %v140, 0.7978846
    %v143 = vmul.f32 %v141, 0.7978846
    %v144 = vtanh.pop %v142
    %v145 = vtanh.pop %v143
    %v146 = vadd.f32 %v144, 1.0
    %v147 = vadd.f32 %v145, 1.0
    %v148 = vmul.f32 %v146, 0.5
    %v149 = vmul.f32 %v147, 0.5
    %v150 = vmul.f32 %v128, %v148
    %v151 = vmul.f32 %v130, %v149
    %v152 = vpack.c.bf16 %v150, %v150
    %v153 = vpack.c.bf16 %v151, %v151
    %v154 = vld [vmem:[%s1] sm:$0xff]
    %v156 = vunpack.c.l.b16 %v154
    %v157 = vunpack.c.h.b16 %v154
    %v158 = vpack.c.b16 %v156, %v156
    %v159 = vpack.c.b16 %v157, %v157
    %v162 = vmul.bf16 %v152, %v158
    %v163 = vmul.bf16 %v153, %v159
    %v164 = vld [vmem:[#allocation2] sm:$0xf]
    %v165 = vld [vmem:[#allocation2 + $0x4] sm:$0xf]
    %v166 = vld [vmem:[#allocation2 + $0x8] sm:$0xf]
    %v167 = vld [vmem:[#allocation2 + $0xc] sm:$0xf]
    %v168 = vld [vmem:[#allocation2 + $0x10] sm:$0xf]
    %v169 = vld [vmem:[#allocation2 + $0x14] sm:$0xf]
    %v170 = vld [vmem:[#allocation2 + $0x18] sm:$0xf]
    %v171 = vld [vmem:[#allocation2 + $0x1c] sm:$0xf]
    %v172 = vld [vmem:[#allocation2 + $0x20] sm:$0xf]
    %v173 = vld [vmem:[#allocation2 + $0x24] sm:$0xf]
    %v174 = vld [vmem:[#allocation2 + $0x28] sm:$0xf]
    %v175 = vld [vmem:[#allocation2 + $0x2c] sm:$0xf]
    %v176 = vld [vmem:[#allocation2 + $0x30] sm:$0xf]
    %v177 = vld [vmem:[#allocation2 + $0x34] sm:$0xf]
    %v178 = vld [vmem:[#allocation2 + $0x38] sm:$0xf]
    %v179 = vld [vmem:[#allocation2 + $0x3c] sm:$0xf]
    %v180 = vld [vmem:[#allocation2 + $0x40] sm:$0xf]
    %v181 = vld [vmem:[#allocation2 + $0x44] sm:$0xf]
    %v182 = vld [vmem:[#allocation2 + $0x48] sm:$0xf]
    %v183 = vld [vmem:[#allocation2 + $0x4c] sm:$0xf]
    %v184 = vld [vmem:[#allocation2 + $0x50] sm:$0xf]
    %v185 = vld [vmem:[#allocation2 + $0x54] sm:$0xf]
    %v186 = vld [vmem:[#allocation2 + $0x58] sm:$0xf]
    %v187 = vld [vmem:[#allocation2 + $0x5c] sm:$0xf]
    %v188 = vld [vmem:[#allocation2 + $0x60] sm:$0xf]
    %v189 = vld [vmem:[#allocation2 + $0x64] sm:$0xf]
    %v190 = vld [vmem:[#allocation2 + $0x68] sm:$0xf]
    %v191 = vld [vmem:[#allocation2 + $0x6c] sm:$0xf]
    %v192 = vld [vmem:[#allocation2 + $0x70] sm:$0xf]
    %v193 = vld [vmem:[#allocation2 + $0x74] sm:$0xf]
    %v194 = vld [vmem:[#allocation2 + $0x78] sm:$0xf]
    %v195 = vld [vmem:[#allocation2 + $0x7c] sm:$0xf]
    %v196 = vld [vmem:[%s5] sm:$0x1]
    %v198 = vlaneseq
    %v199 = vshrl.u32 %v198, 7
    %v200 = vsub.s32 0, %v199
    %v201 = vrot.slane %v196, %v200
    %v235 = vunpack.c.l.b16 %v164
    %v236 = vunpack.c.l.b16 %v165
    %v237 = vunpack.c.l.b16 %v166
    %v238 = vunpack.c.l.b16 %v167
    %v239 = vunpack.c.l.b16 %v168
    %v240 = vunpack.c.l.b16 %v169
    %v241 = vunpack.c.l.b16 %v170
    %v242 = vunpack.c.l.b16 %v171
    %v243 = vunpack.c.l.b16 %v172
    %v244 = vunpack.c.l.b16 %v173
    %v245 = vunpack.c.l.b16 %v174
    %v246 = vunpack.c.l.b16 %v175
    %v247 = vunpack.c.l.b16 %v176
    %v248 = vunpack.c.l.b16 %v177
    %v249 = vunpack.c.l.b16 %v178
    %v250 = vunpack.c.l.b16 %v179
    %v251 = vunpack.c.l.b16 %v180
    %v252 = vunpack.c.l.b16 %v181
    %v253 = vunpack.c.l.b16 %v182
    %v254 = vunpack.c.l.b16 %v183
    %v255 = vunpack.c.l.b16 %v184
    %v256 = vunpack.c.l.b16 %v185
    %v257 = vunpack.c.l.b16 %v186
    %v258 = vunpack.c.l.b16 %v187
    %v259 = vunpack.c.l.b16 %v188
    %v260 = vunpack.c.l.b16 %v189
    %v261 = vunpack.c.l.b16 %v190
    %v262 = vunpack.c.l.b16 %v191
    %v263 = vunpack.c.l.b16 %v192
    %v264 = vunpack.c.l.b16 %v193
    %v265 = vunpack.c.l.b16 %v194
    %v266 = vunpack.c.l.b16 %v195
    %v267 = vpack.c.b16 %v236, %v235
    %v268 = vpack.c.b16 %v238, %v237
    %v269 = vpack.c.b16 %v240, %v239
    %v270 = vpack.c.b16 %v242, %v241
    %v271 = vpack.c.b16 %v244, %v243
    %v272 = vpack.c.b16 %v246, %v245
    %v273 = vpack.c.b16 %v248, %v247
    %v274 = vpack.c.b16 %v250, %v249
    %v275 = vpack.c.b16 %v252, %v251
    %v276 = vpack.c.b16 %v254, %v253
    %v277 = vpack.c.b16 %v256, %v255
    %v278 = vpack.c.b16 %v258, %v257
    %v279 = vpack.c.b16 %v260, %v259
    %v280 = vpack.c.b16 %v262, %v261
    %v281 = vpack.c.b16 %v264, %v263
    %v282 = vpack.c.b16 %v266, %v265
    %299 = vmatprep.subr.bf16.mxu0 0
    %300 = vmatpush1.bf16.msra.mxu0 %v274
    %301 = vmatprep.subr.bf16.mxu0 0
    %302 = vmatpush1.bf16.msra.mxu0 %v273
    %303 = vmatprep.subr.bf16.mxu0 0
    %304 = vmatpush1.bf16.msra.mxu0 %v272
    %305 = vmatprep.subr.bf16.mxu0 0
    %306 = vmatpush1.bf16.msra.mxu0 %v271
    %307 = vmatprep.subr.bf16.mxu0 0
    %308 = vmatpush1.bf16.msra.mxu0 %v270
    %309 = vmatprep.subr.bf16.mxu0 0
    %310 = vmatpush1.bf16.msra.mxu0 %v269
    %311 = vmatprep.subr.bf16.mxu0 0
    %312 = vmatpush1.bf16.msra.mxu0 %v268
    %313 = vmatprep.subr.bf16.mxu0 0
    %314 = vmatpush1.bf16.msra.mxu0 %v267
    %315 = vmatprep.subr.bf16.mxu0 0
    %316 = vmatpush2.bf16.msra.mxu0 %v282
    %317 = vmatprep.subr.bf16.mxu0 0
    %318 = vmatpush2.bf16.msra.mxu0 %v281
    %319 = vmatprep.subr.bf16.mxu0 0
    %320 = vmatpush2.bf16.msra.mxu0 %v280
    %321 = vmatprep.subr.bf16.mxu0 0
    %322 = vmatpush2.bf16.msra.mxu0 %v279
    %323 = vmatprep.subr.bf16.mxu0 0
    %324 = vmatpush2.bf16.msra.mxu0 %v278
    %325 = vmatprep.subr.bf16.mxu0 0
    %326 = vmatpush2.bf16.msra.mxu0 %v277
    %327 = vmatprep.subr.bf16.mxu0 0
    %328 = vmatpush2.bf16.msra.mxu0 %v276
    %329 = vmatprep.subr.bf16.mxu0 0
    %330 = vmatpush2.bf16.msra.mxu0 %v275
    %331 = vmatprep.mubr.bf16.mxu0 %v163
    %332 = vmatmul.mubr.bf16.gmra.mxu0 %v162
    %v333 = vpop.f32.mrf.mxu0
    %v334 = vadd.f32 %v201, %v333
    %v335 = vpop.f32.mrf.mxu0
    %v336 = vpop.f32.mrf.mxu0
    %v337 = vpop.f32.mrf.mxu0
    %338 = vdwg.mxu0
    %339 = vst [vmem:[%s10] sm:$0xff] %v334
    %v340 = vxor.u32 %v334, 2147483648
    %v341 = vmul.f32 %v340, 1.442695
    %v342 = vpow.pop %v341
    %v343 = vadd.f32 %v342, 1.0
    %v344 = vrcp.pop %v343
    %v345 = vmul.f32 1.0, %v344
    %v346 = vld [vmem:[%s6] sm:$0xf]
    %v347 = vld [vmem:[%s6 + $0x4] sm:$0xf]
    %v348 = vld [vmem:[%s6 + $0x8] sm:$0xf]
    %v349 = vunpack.c.l.bf16 %v346
    %v350 = vunpack.c.l.bf16 %v347
    %v351 = vunpack.c.l.bf16 %v348
    %v353 = vcombine.high %v345, %v345
    %v355 = vunpack.c.l.s4 1966171168
    %v356 = vunpack.c.0.s8 %v355
    %v357 = vlaneseq
    %v358 = vshrl.u32 %v357, 7
    %v359 = vsub.s32 %v356, %v358
    %v360 = vrot.slane %v345, %v359
    %v362 = vunpack.c.l.s4 1966171168
    %v363 = vunpack.c.0.s8 %v362
    %v364 = vlaneseq
    %v365 = vshrl.u32 %v364, 7
    %v366 = vsub.s32 %v363, %v365
    %v367 = vrot.slane %v353, %v366
    %v368 = vcombine.high %v360, %v360
    %v369 = vcombine.high %v367, %v367
    %v371 = vunpack.c.l.s4 1966171168
    %v372 = vunpack.c.0.s8 %v371
    %v373 = vlaneseq
    %v374 = vshrl.u32 %v373, 7
    %v375 = vsub.s32 %v372, %v374
    %v376 = vrot.slane %v360, %v375
    %v378 = vunpack.c.l.s4 1966171168
    %v379 = vunpack.c.0.s8 %v378
    %v380 = vlaneseq
    %v381 = vshrl.u32 %v380, 7
    %v382 = vsub.s32 %v379, %v381
    %v383 = vrot.slane %v367, %v382
    %v385 = vunpack.c.l.s4 1966171168
    %v386 = vunpack.c.0.s8 %v385
    %v387 = vlaneseq
    %v388 = vshrl.u32 %v387, 7
    %v389 = vsub.s32 %v386, %v388
    %v390 = vrot.slane %v368, %v389
    %v392 = vunpack.c.l.s4 1966171168
    %v393 = vunpack.c.0.s8 %v392
    %v394 = vlaneseq
    %v395 = vshrl.u32 %v394, 7
    %v396 = vsub.s32 %v393, %v395
    %v397 = vrot.slane %v369, %v396
    %v398 = vcombine.high %v376, %v376
    %v399 = vcombine.high %v383, %v383
    %v400 = vcombine.high %v390, %v390
    %v401 = vcombine.high %v397, %v397
    %v402 = vlaneseq
    %v403 = vshrl.u32 %v402, 7
    %v404 = vsub.s32 0, %v403
    %v405 = vrot.slane %v376, %v404
    %v406 = vlaneseq
    %v407 = vshrl.u32 %v406, 7
    %v408 = vsub.s32 0, %v407
    %v409 = vrot.slane %v390, %v408
    %v410 = vlaneseq
    %v411 = vshrl.u32 %v410, 7
    %v412 = vsub.s32 0, %v411
    %v413 = vrot.slane %v398, %v412
    %v414 = vlaneseq
    %v415 = vshrl.u32 %v414, 7
    %v416 = vsub.s32 0, %v415
    %v417 = vrot.slane %v400, %v416
    %v418 = vlaneseq
    %v419 = vshrl.u32 %v418, 7
    %v420 = vsub.s32 0, %v419
    %v421 = vrot.slane %v383, %v420
    %v422 = vlaneseq
    %v423 = vshrl.u32 %v422, 7
    %v424 = vsub.s32 0, %v423
    %v425 = vrot.slane %v397, %v424
    %v426 = vlaneseq
    %v427 = vshrl.u32 %v426, 7
    %v428 = vsub.s32 0, %v427
    %v429 = vrot.slane %v399, %v428
    %v430 = vlaneseq
    %v431 = vshrl.u32 %v430, 7
    %v432 = vsub.s32 0, %v431
    %v433 = vrot.slane %v401, %v432
    %v442 = vadd.f32 %v405, %v349
    %v443 = vadd.f32 %v405, %v350
    %v444 = vadd.f32 %v405, %v351
    %v445 = vadd.f32 %v409, %v349
    %v446 = vadd.f32 %v409, %v350
    %v447 = vadd.f32 %v409, %v351
    %v448 = vadd.f32 %v413, %v349
    %v449 = vadd.f32 %v413, %v350
    %v450 = vadd.f32 %v413, %v351
    %v451 = vadd.f32 %v417, %v349
    %v452 = vadd.f32 %v417, %v350
    %v453 = vadd.f32 %v417, %v351
    %v454 = vadd.f32 %v421, %v349
    %v455 = vadd.f32 %v421, %v350
    %v456 = vadd.f32 %v421, %v351
    %v457 = vadd.f32 %v425, %v349
    %v458 = vadd.f32 %v425, %v350
    %v459 = vadd.f32 %v425, %v351
    %v460 = vadd.f32 %v429, %v349
    %v461 = vadd.f32 %v429, %v350
    %v462 = vadd.f32 %v429, %v351
    %v463 = vadd.f32 %v433, %v349
    %v464 = vadd.f32 %v433, %v350
    %v465 = vadd.f32 %v433, %v351
    %466 = vmax.xlane.f32.xlu0 %v442
    %v467 = vpop.xlane.xlu0 %466
    %468 = vmax.xlane.f32.xlu0 %v443
    %v469 = vpop.xlane.xlu0 %468
    %470 = vmax.xlane.f32.xlu0 %v444
    %v471 = vpop.xlane.xlu0 %470
    %472 = vmax.xlane.f32.xlu0 %v445
    %v473 = vpop.xlane.xlu0 %472
    %474 = vmax.xlane.f32.xlu0 %v446
    %v475 = vpop.xlane.xlu0 %474
    %476 = vmax.xlane.f32.xlu0 %v447
    %v477 = vpop.xlane.xlu0 %476
    %478 = vmax.xlane.f32.xlu0 %v448
    %v479 = vpop.xlane.xlu0 %478
    %480 = vmax.xlane.f32.xlu0 %v449
    %v481 = vpop.xlane.xlu0 %480
    %482 = vmax.xlane.f32.xlu0 %v450
    %v483 = vpop.xlane.xlu0 %482
    %484 = vmax.xlane.f32.xlu0 %v451
    %v485 = vpop.xlane.xlu0 %484
    %486 = vmax.xlane.f32.xlu0 %v452
    %v487 = vpop.xlane.xlu0 %486
    %488 = vmax.xlane.f32.xlu0 %v453
    %v489 = vpop.xlane.xlu0 %488
    %490 = vmax.xlane.f32.xlu0 %v454
    %v491 = vpop.xlane.xlu0 %490
    %492 = vmax.xlane.f32.xlu0 %v455
    %v493 = vpop.xlane.xlu0 %492
    %494 = vmax.xlane.f32.xlu0 %v456
    %v495 = vpop.xlane.xlu0 %494
    %496 = vmax.xlane.f32.xlu0 %v457
    %v497 = vpop.xlane.xlu0 %496
    %498 = vmax.xlane.f32.xlu0 %v458
    %v499 = vpop.xlane.xlu0 %498
    %500 = vmax.xlane.f32.xlu0 %v459
    %v501 = vpop.xlane.xlu0 %500
    %502 = vmax.xlane.f32.xlu0 %v460
    %v503 = vpop.xlane.xlu0 %502
    %504 = vmax.xlane.f32.xlu0 %v461
    %v505 = vpop.xlane.xlu0 %504
    %506 = vmax.xlane.f32.xlu0 %v462
    %v507 = vpop.xlane.xlu0 %506
    %508 = vmax.xlane.f32.xlu0 %v463
    %v509 = vpop.xlane.xlu0 %508
    %510 = vmax.xlane.f32.xlu0 %v464
    %v511 = vpop.xlane.xlu0 %510
    %512 = vmax.xlane.f32.xlu0 %v465
    %v513 = vpop.xlane.xlu0 %512
    %v514 = vld [vmem:[%s7] sm:$0xff]
    %v515 = vld [vmem:[%s7 + $0x8] sm:$0xff]
    %v516 = vld [vmem:[%s7 + $0x10] sm:$0xff]
    %v517 = vmul.f32 %v467, %v514
    %v518 = vmul.f32 %v469, %v515
    %v519 = vmul.f32 %v471, %v516
    %v520 = vmul.f32 %v473, %v514
    %v521 = vmul.f32 %v475, %v515
    %v522 = vmul.f32 %v477, %v516
    %v523 = vmul.f32 %v479, %v514
    %v524 = vmul.f32 %v481, %v515
    %v525 = vmul.f32 %v483, %v516
    %v526 = vmul.f32 %v485, %v514
    %v527 = vmul.f32 %v487, %v515
    %v528 = vmul.f32 %v489, %v516
    %v529 = vmul.f32 %v491, %v514
    %v530 = vmul.f32 %v493, %v515
    %v531 = vmul.f32 %v495, %v516
    %v532 = vmul.f32 %v497, %v514
    %v533 = vmul.f32 %v499, %v515
    %v534 = vmul.f32 %v501, %v516
    %v535 = vmul.f32 %v503, %v514
    %v536 = vmul.f32 %v505, %v515
    %v537 = vmul.f32 %v507, %v516
    %v538 = vmul.f32 %v509, %v514
    %v539 = vmul.f32 %v511, %v515
    %v540 = vmul.f32 %v513, %v516
    %v541 = vadd.f32 %v517, %v518
    %v542 = vadd.f32 %v541, %v519
    %v543 = vrot.slane %v542, 4
    %v544 = vadd.f32 %v542, %v543
    %v545 = vrot.slane %v544, 2
    %v546 = vadd.f32 %v544, %v545
    %v547 = vrot.slane %v546, 1
    %v548 = vadd.f32 %v546, %v547
    %v549 = vadd.f32 %v520, %v521
    %v550 = vadd.f32 %v549, %v522
    %v551 = vrot.slane %v550, 4
    %v552 = vadd.f32 %v550, %v551
    %v553 = vrot.slane %v552, 2
    %v554 = vadd.f32 %v552, %v553
    %v555 = vrot.slane %v554, 1
    %v556 = vadd.f32 %v554, %v555
    %v557 = vadd.f32 %v523, %v524
    %v558 = vadd.f32 %v557, %v525
    %v559 = vrot.slane %v558, 4
    %v560 = vadd.f32 %v558, %v559
    %v561 = vrot.slane %v560, 2
    %v562 = vadd.f32 %v560, %v561
    %v563 = vrot.slane %v562, 1
    %v564 = vadd.f32 %v562, %v563
    %v565 = vadd.f32 %v526, %v527
    %v566 = vadd.f32 %v565, %v528
    %v567 = vrot.slane %v566, 4
    %v568 = vadd.f32 %v566, %v567
    %v569 = vrot.slane %v568, 2
    %v570 = vadd.f32 %v568, %v569
    %v571 = vrot.slane %v570, 1
    %v572 = vadd.f32 %v570, %v571
    %v573 = vadd.f32 %v529, %v530
    %v574 = vadd.f32 %v573, %v531
    %v575 = vrot.slane %v574, 4
    %v576 = vadd.f32 %v574, %v575
    %v577 = vrot.slane %v576, 2
    %v578 = vadd.f32 %v576, %v577
    %v579 = vrot.slane %v578, 1
    %v580 = vadd.f32 %v578, %v579
    %v581 = vadd.f32 %v532, %v533
    %v582 = vadd.f32 %v581, %v534
    %v583 = vrot.slane %v582, 4
    %v584 = vadd.f32 %v582, %v583
    %v585 = vrot.slane %v584, 2
    %v586 = vadd.f32 %v584, %v585
    %v587 = vrot.slane %v586, 1
    %v588 = vadd.f32 %v586, %v587
    %v589 = vadd.f32 %v535, %v536
    %v590 = vadd.f32 %v589, %v537
    %v591 = vrot.slane %v590, 4
    %v592 = vadd.f32 %v590, %v591
    %v593 = vrot.slane %v592, 2
    %v594 = vadd.f32 %v592, %v593
    %v595 = vrot.slane %v594, 1
    %v596 = vadd.f32 %v594, %v595
    %v597 = vadd.f32 %v538, %v539
    %v598 = vadd.f32 %v597, %v540
    %v599 = vrot.slane %v598, 4
    %v600 = vadd.f32 %v598, %v599
    %v601 = vrot.slane %v600, 2
    %v602 = vadd.f32 %v600, %v601
    %v603 = vrot.slane %v602, 1
    %v604 = vadd.f32 %v602, %v603
    %v605 = vld [vmem:[%s8] sm:$0x1]
    %vm606 = vcmp.gt.f32.partialorder %v605, 0.0
    %v607 = vsel %vm606, 1, 0
    %v608 = vlaneseq
    %v609 = vshrl.u32 %v608, 7
    %v610 = vsub.s32 0, %v609
    %v611 = vrot.slane %v607, %v610
    %vm612 = vcmp.eq.s32.totalorder %v611, 1
    %vm621 = vcmask 1041409
    %v622 = vsel %vm621, %v556, %v548
    %vm623 = vcmask 1042434
    %v624 = vsel %vm623, %v564, %v622
    %vm625 = vcmask 1043459
    %v626 = vsel %vm625, %v572, %v624
    %vm627 = vcmask 1044484
    %v628 = vsel %vm627, %v580, %v626
    %vm629 = vcmask 1045509
    %v630 = vsel %vm629, %v588, %v628
    %vm631 = vcmask 1046534
    %v632 = vsel %vm631, %v596, %v630
    %vm633 = vcmask 1047559
    %v634 = vsel %vm633, %v604, %v632
    %v636 = vsel %vm612, %v634, %v345
    %v637 = vld [vmem:[%s9] sm:$0x1]
    %vm638 = vcmp.gt.f32.partialorder %v637, 0.0
    %v639 = vsel %vm638, 1, 0
    %v640 = vlaneseq
    %v641 = vshrl.u32 %v640, 7
    %v642 = vsub.s32 0, %v641
    %v643 = vrot.slane %v639, %v642
    %vm644 = vcmp.eq.s32.totalorder %v643, 1
    %v645 = vsel %vm644, %v636, -1e+30
    %646 = vmax.xlane.f32.xlu0 %v645
    %v647 = vpop.xlane.xlu0 %646
    %vm648 = vcmp.ge.f32.partialorder %v645, %v647
    %vm649 = vmand %vm648, %vm644
    %v650 = vlaneseq
    %v651 = vand.u32 %v650, 127
    %v652 = vsel %vm649, %v651, 128
    %v653 = vand.u32 %v652, 65535
    %v654 = vshra.s32 %v652, 16
    %v655 = vcvt.s32.f32 %v653
    %v656 = vcvt.s32.f32 %v654
    %657 = vmin.xlane.f32.xlu0 %v656
    %v658 = vpop.xlane.xlu0 %657
    %vm659 = vcmp.eq.f32.partialorder %v656, %v658
    %v660 = vsel %vm659, %v655, inf
    %661 = vmin.xlane.f32.xlu0 %v660
    %v662 = vpop.xlane.xlu0 %661
    %v663 = vcvt.f32.s32 %v662
    %v664 = vcvt.f32.s32 %v658
    %v665 = vshll.u32 %v664, 16
    %v666 = vadd.s32 %v665, %v663
    %vm667 = vcmp.eq.s32.totalorder %v651, %v666
    %v668 = vsel %vm667, 1, 0
    %v669 = vcvt.s32.f32 %v668
    %v670 = vsel %vm644, %v669, 1.0
    %v671 = vmul.f32 %v636, %v670
    %672 = vst [vmem:[%s11] sm:$0xff] %v671
    // Predicated region
    $region46: #{_forward_predict.1} parent=1 // pred_check
      _
    $region47: #{_forward_predict.1} parent=1 // pred_check_branch
      %674 = sbr.rel (0) target = $region49
    $region48: #{_forward_predict.1} parent=1 // pred_region
      _
    $region49: #{_forward_predict.1} parent=1 // pred_fallthru
      _
    // Predicated region
    $region50: #{_forward_predict.1} parent=1 // pred_check
      _
    $region51: #{_forward_predict.1} parent=1 // pred_check_branch
      %676 = sbr.rel (0) target = $region53
    $region52: #{_forward_predict.1} parent=1 // pred_region
      _
    $region53: #{_forward_predict.1} parent=1 // pred_fallthru
      _
    // Predicated region
    $region54: #{_forward_predict.1} parent=1 // pred_check
      _
    $region55: #{_forward_predict.1} parent=1 // pred_check_branch
      %678 = sbr.rel (0) target = $region57
    $region56: #{_forward_predict.1} parent=1 // pred_region
      _
    $region57: #{_forward_predict.1} parent=1 // pred_fallthru
      _
    // Predicated region
    $region58: #{_forward_predict.1} parent=1 // pred_check
      _
    $region59: #{_forward_predict.1} parent=1 // pred_check_branch
      %680 = sbr.rel (0) target = $region61
    $region60: #{_forward_predict.1} parent=1 // pred_region
      _
    $region61: #{_forward_predict.1} parent=1 // pred_fallthru
      _
    %681 = vsyncpa [#allocation3], 1

</llo_original>
